<compile_context>
chip_gen: v7x
topology: tpu7x:2x2x1
jax: 0.10.0
libtpu: 0.0.40
codegen_flags: <defaults>
</compile_context>

<pallas_src>
import functools

import jax
import jax.numpy as jnp
from jax import lax
from jax.experimental import pallas as pl
from jax.experimental.pallas import tpu as pltpu

_LANE = 128
_SUBLANE = 8
# v7x / v4 / v5p have 2 TensorCores per chip; on 1-TC chips (v5e/v6e) the extra
# "parallel" grid slice costs at most one fully-masked tile.
_NUM_CORES = 2


def _round_up(v: int, m: int) -> int:
    return ((v + m - 1) // m) * m


def _logitnorm_loss_kernel(x_ref, tgt_ref, o_ref, acc_ref, *, inv_t, n_rows):
    """One (TM, C) logits tile: LogitNorm + per-row cross-entropy.

    Per-row losses accumulate into a (TM, 1) VMEM scratch across the row-tile
    axis; the cross-sublane reduction + store happen once in the epilogue.
    """
    i = pl.program_id(1)          # row-tile index within this core
    tm = x_ref.shape[0]

    @pl.when(i == 0)
    def _():
        acc_ref[...] = jnp.zeros_like(acc_ref)

    # Global row index of each row in this tile. The index_map clamps the DMA to
    # a valid tile, so duplicated / out-of-range tiles are simply masked here.
    tile = pl.program_id(0) * pl.num_programs(1) + i
    row = tile * tm + lax.broadcasted_iota(jnp.int32, (tm, 1), 0)
    valid = row < n_rows                                              # (TM, 1)

    x = x_ref[...].astype(jnp.float32)                                # (TM, C)
    tgt = tgt_ref[...]                                                # (TM, 1) int32

    # LogitNorm: z = x / (||x||_2 + 1e-7) / t   (one divide per row, then mults)
    norm = jnp.sqrt(jnp.sum(x * x, axis=-1, keepdims=True)) + 1e-7    # (TM, 1)
    z = x * (inv_t / norm)                                            # (TM, C)

    # Cross-entropy with integer targets: loss_i = logsumexp(z_i) - z_i[target_i]
    m = jnp.max(z, axis=-1, keepdims=True)                            # (TM, 1)
    lse = m + jnp.log(jnp.sum(jnp.exp(z - m), axis=-1, keepdims=True))
    cls = lax.broadcasted_iota(jnp.int32, z.shape, 1)                 # (TM, C)
    z_t = jnp.sum(jnp.where(cls == tgt, z, 0.0), axis=-1, keepdims=True)

    acc_ref[...] += jnp.where(valid, lse - z_t, 0.0)                  # (TM, 1)

    @pl.when(i == pl.num_programs(1) - 1)
    def _():
        o_ref[...] = jnp.sum(acc_ref[...], axis=0, keepdims=True).reshape(1, 1, 1)


def logitnorm_loss(x, target, t: float = 1.0, *,
                   target_tile_bytes: int = 2 << 20,
                   vmem_budget_bytes: int = 16 << 20):
    """x: (N, C) float32/bf16 logits, target: (N,) int class indices -> scalar mean loss."""
    n, c = x.shape
    c_lanes = _round_up(c, _LANE)

    # Per-row VMEM footprint (lane padding included): logits double-buffered,
    # (TM,1) int32 targets double-buffered, (TM,1) f32 loss scratch.
    per_row_vmem = 2 * c_lanes * 4 + 2 * _LANE * 4 + _LANE * 4

    # Row tile: stream ~target_tile_bytes of logits per grid step, bounded by the
    # VMEM budget; multiple of 8 (sublane), or exactly N when N is small.
    tm = min(target_tile_bytes // (4 * c_lanes), vmem_budget_bytes // per_row_vmem)
    tm = max(_SUBLANE, (tm // _SUBLANE) * _SUBLANE)
    if tm >= n:
        tm = n                      # block == full row extent (always legal)

    tiles = pl.cdiv(n, tm)
    tiles_per_core = pl.cdiv(tiles, _NUM_CORES)

    def row_map(cidx, i):
        # Clamp so the DMA never targets a block fully past the array end; the
        # kernel masks those (duplicated) tiles out of the sum.
        return (jnp.minimum(cidx * tiles_per_core + i, tiles - 1), 0)

    tgt2d = target.astype(jnp.int32).reshape(n, 1)

    footprint = per_row_vmem * tm
    vmem_limit = int(min(max(2 * footprint, 4 << 20), 32 << 20))

    partials = pl.pallas_call(
        functools.partial(_logitnorm_loss_kernel, inv_t=float(1.0 / t), n_rows=n),
        out_shape=jax.ShapeDtypeStruct((_NUM_CORES, 1, 1), jnp.float32),
        grid=(_NUM_CORES, tiles_per_core),
        in_specs=[
            pl.BlockSpec((tm, c), row_map),   # logits tile (class dim whole)
            pl.BlockSpec((tm, 1), row_map),   # target indices
        ],
        out_specs=pl.BlockSpec((1, 1, 1), lambda cidx, i: (cidx, 0, 0)),
        scratch_shapes=[pltpu.VMEM((tm, 1), jnp.float32)],
        compiler_params=pltpu.CompilerParams(
            # Leading axis: per-core split (megacore). Inner axis: reduction into
            # the resident per-core accumulator.
            dimension_semantics=("parallel", "arbitrary"),
            vmem_limit_bytes=vmem_limit),
    )(x, tgt2d)

    # reduction='mean' of F.cross_entropy: divide by the real batch size.
    return jnp.sum(partials) / n


def reference_logitnorm_loss(x, target, t: float = 1.0):
    """Pure-JAX mirror of the PyTorch LogitNormLoss.forward for validation."""
    x = x.astype(jnp.float32)
    norms = jnp.sqrt(jnp.sum(x * x, axis=-1, keepdims=True)) + 1e-7
    z = x / norms / t
    logp = jax.nn.log_softmax(z, axis=-1)
    nll = -jnp.take_along_axis(logp, target[:, None].astype(jnp.int32), axis=-1)
    return jnp.mean(nll)


if __name__ == "__main__":
    N, C = 16, 10   # batch of 16 samples, 10 classes

    key = jax.random.PRNGKey(0)
    k_x, k_t = jax.random.split(key)
    x = jax.random.normal(k_x, (N, C), jnp.float32) * 3.0
    target = jax.random.randint(k_t, (N,), 0, C, jnp.int32)

    for t in (1.0, 0.07):   # default temperature and a typical LogitNorm temperature
        loss = logitnorm_loss(x, target, t=t)
        loss = jax.block_until_ready(loss)
        ref = reference_logitnorm_loss(x, target, t=t)
        assert loss.shape == ()
        assert jnp.allclose(loss, ref, atol=1e-5, rtol=1e-5), (t, loss, ref)

    print("KERNEL_OK")
</pallas_src>

<mosaic_0001>
module attributes {stable_mosaic.version = 11 : i64} {
  func.func @_logitnorm_loss_kernel(%arg0: i32, %arg1: i32, %arg2: memref<16x10xf32, #tpu.memory_space<vmem>>, %arg3: memref<16x1xi32, #tpu.memory_space<vmem>>, %arg4: memref<1x1x1xf32, #tpu.memory_space<vmem>>, %arg5: memref<16x1xf32, #tpu.memory_space<vmem>>) attributes {dimension_semantics = [#tpu.dimension_semantics<parallel>, #tpu.dimension_semantics<arbitrary>], iteration_bounds = array<i64: 2, 1>, scalar_prefetch = 0 : i64, scratch_operands = 1 : i64, tpu.core_type = #tpu.core_type<tc>, window_params = [{transform_indices = @transform_0, window_bounds = array<i64: 16, 10>}, {transform_indices = @transform_1, window_bounds = array<i64: 16, 1>}, {transform_indices = @transform_2, window_bounds = array<i64: 1, 1, 1>}]} {
    %c0_i32 = arith.constant 0 : i32
    %0 = arith.cmpi eq, %arg1, %c0_i32 : i32
    %1 = arith.extui %0 : i1 to i32
    %c0_i32_0 = arith.constant 0 : i32
    %2 = arith.cmpi ne, %1, %c0_i32_0 : i32
    scf.if %2 {
      %cst_18 = arith.constant 0.000000e+00 : f32
      %48 = vector.broadcast %cst_18 : f32 to vector<16x1xf32>
      %c0_19 = arith.constant 0 : index
      %c0_20 = arith.constant 0 : index
      %49 = vector.load %arg5[%c0_19, %c0_20] : memref<16x1xf32, #tpu.memory_space<vmem>>, vector<16x1xf32>
      tpu.vector_store %arg5[%c0_19, %c0_20], %48 {strides = array<i32>} : memref<16x1xf32, #tpu.memory_space<vmem>>, vector<16x1xf32>,
    } else {
    }
    %c1_i32 = arith.constant 1 : i32
    %3 = arith.muli %arg0, %c1_i32 : i32
    %4 = arith.addi %3, %arg1 : i32
    %c16_i32 = arith.constant 16 : i32
    %5 = arith.muli %4, %c16_i32 : i32
    %6 = tpu.iota {dimensions = array<i32: 0>} : vector<16x1xi32>
    %7 = vector.broadcast %5 : i32 to vector<16x1xi32>
    %8 = arith.addi %7, %6 : vector<16x1xi32>
    %c16_i32_1 = arith.constant 16 : i32
    %9 = vector.broadcast %c16_i32_1 : i32 to vector<16x1xi32>
    %10 = arith.cmpi slt, %8, %9 : vector<16x1xi32>
    %c0 = arith.constant 0 : index
    %c0_2 = arith.constant 0 : index
    %11 = vector.load %arg2[%c0, %c0_2] : memref<16x10xf32, #tpu.memory_space<vmem>>, vector<16x10xf32>
    %c0_3 = arith.constant 0 : index
    %c0_4 = arith.constant 0 : index
    %12 = vector.load %arg3[%c0_3, %c0_4] : memref<16x1xi32, #tpu.memory_space<vmem>>, vector<16x1xi32>
    %13 = arith.mulf %11, %11 : vector<16x10xf32>
    %cst = arith.constant dense<0.000000e+00> : vector<16xf32>
    %14 = vector.multi_reduction <add>, %13, %cst [1] : vector<16x10xf32> to vector<16xf32>
    %15 = vector.shape_cast %14 : vector<16xf32> to vector<16x1xf32>
    %16 = math.sqrt %15 : vector<16x1xf32>
    %cst_5 = arith.constant 1.000000e-07 : f32
    %17 = vector.broadcast %cst_5 : f32 to vector<16x1xf32>
    %18 = arith.addf %16, %17 : vector<16x1xf32>
    %cst_6 = arith.constant 1.000000e+00 : f32
    %19 = vector.broadcast %cst_6 : f32 to vector<16x1xf32>
    %20 = arith.divf %19, %18 : vector<16x1xf32>
    %21 = vector.broadcast %20 : vector<16x1xf32> to vector<16x10xf32>
    %22 = arith.mulf %11, %21 : vector<16x10xf32>
    %cst_7 = arith.constant dense<0xFF800000> : vector<16xf32>
    %23 = vector.multi_reduction <maximumf>, %22, %cst_7 [1] : vector<16x10xf32> to vector<16xf32>
    %24 = vector.shape_cast %23 : vector<16xf32> to vector<16x1xf32>
    %25 = vector.broadcast %24 : vector<16x1xf32> to vector<16x10xf32>
    %26 = arith.subf %22, %25 : vector<16x10xf32>
    %27 = math.exp %26 : vector<16x10xf32>
    %cst_8 = arith.constant dense<0.000000e+00> : vector<16xf32>
    %28 = vector.multi_reduction <add>, %27, %cst_8 [1] : vector<16x10xf32> to vector<16xf32>
    %29 = vector.shape_cast %28 : vector<16xf32> to vector<16x1xf32>
    %30 = math.log %29 : vector<16x1xf32>
    %31 = arith.addf %24, %30 : vector<16x1xf32>
    %32 = tpu.iota {dimensions = array<i32: 1>} : vector<16x10xi32>
    %33 = vector.broadcast %12 : vector<16x1xi32> to vector<16x10xi32>
    %34 = arith.cmpi eq, %32, %33 : vector<16x10xi32>
    %cst_9 = arith.constant 0.000000e+00 : f32
    %35 = vector.broadcast %cst_9 : f32 to vector<16x10xf32>
    %36 = arith.select %34, %22, %35 : vector<16x10xi1>, vector<16x10xf32>
    %cst_10 = arith.constant dense<0.000000e+00> : vector<16xf32>
    %37 = vector.multi_reduction <add>, %36, %cst_10 [1] : vector<16x10xf32> to vector<16xf32>
    %38 = vector.shape_cast %37 : vector<16xf32> to vector<16x1xf32>
    %c0_11 = arith.constant 0 : index
    %c0_12 = arith.constant 0 : index
    %39 = vector.load %arg5[%c0_11, %c0_12] : memref<16x1xf32, #tpu.memory_space<vmem>>, vector<16x1xf32>
    %40 = arith.subf %31, %38 : vector<16x1xf32>
    %cst_13 = arith.constant 0.000000e+00 : f32
    %41 = vector.broadcast %cst_13 : f32 to vector<16x1xf32>
    %42 = arith.select %10, %40, %41 : vector<16x1xi1>, vector<16x1xf32>
    %43 = arith.addf %39, %42 : vector<16x1xf32>
    %c0_14 = arith.constant 0 : index
    %c0_15 = arith.constant 0 : index
    %44 = vector.load %arg5[%c0_14, %c0_15] : memref<16x1xf32, #tpu.memory_space<vmem>>, vector<16x1xf32>
    tpu.vector_store %arg5[%c0_14, %c0_15], %43 {strides = array<i32>} : memref<16x1xf32, #tpu.memory_space<vmem>>, vector<16x1xf32>,
    %c0_i32_16 = arith.constant 0 : i32
    %45 = arith.cmpi eq, %arg1, %c0_i32_16 : i32
    %46 = arith.extui %45 : i1 to i32
    %c0_i32_17 = arith.constant 0 : i32
    %47 = arith.cmpi ne, %46, %c0_i32_17 : i32
    scf.if %47 {
      %c0_18 = arith.constant 0 : index
      %c0_19 = arith.constant 0 : index
      %48 = vector.load %arg5[%c0_18, %c0_19] : memref<16x1xf32, #tpu.memory_space<vmem>>, vector<16x1xf32>
      %cst_20 = arith.constant dense<0.000000e+00> : vector<1xf32>
      %49 = vector.multi_reduction <add>, %48, %cst_20 [0] : vector<16x1xf32> to vector<1xf32>
      %50 = vector.shape_cast %49 : vector<1xf32> to vector<1x1xf32>
      %51 = vector.shape_cast %50 : vector<1x1xf32> to vector<1x1x1xf32>
      %c0_21 = arith.constant 0 : index
      %c0_22 = arith.constant 0 : index
      %c0_23 = arith.constant 0 : index
      %52 = vector.load %arg4[%c0_21, %c0_22, %c0_23] : memref<1x1x1xf32, #tpu.memory_space<vmem>>, vector<1x1x1xf32>
      tpu.vector_store %arg4[%c0_21, %c0_22, %c0_23], %51 {strides = array<i32>} : memref<1x1x1xf32, #tpu.memory_space<vmem>>, vector<1x1x1xf32>,
    } else {
    }
    return
  }
  func.func @transform_0(%arg0: i32, %arg1: i32) -> (i32, i32) {
    %c1_i32 = arith.constant 1 : i32
    %0 = arith.muli %arg0, %c1_i32 : i32
    %1 = arith.addi %0, %arg1 : i32
    %c0_i32 = arith.constant 0 : i32
    %2 = arith.minsi %1, %c0_i32 : i32
    %c0_i32_0 = arith.constant 0 : i32
    %c0_i32_1 = arith.constant 0 : i32
    return %2, %c0_i32_0 : i32, i32
  }
  func.func @transform_1(%arg0: i32, %arg1: i32) -> (i32, i32) {
    %c1_i32 = arith.constant 1 : i32
    %0 = arith.muli %arg0, %c1_i32 : i32
    %1 = arith.addi %0, %arg1 : i32
    %c0_i32 = arith.constant 0 : i32
    %2 = arith.minsi %1, %c0_i32 : i32
    %c0_i32_0 = arith.constant 0 : i32
    %c0_i32_1 = arith.constant 0 : i32
    return %2, %c0_i32_0 : i32, i32
  }
  func.func @transform_2(%arg0: i32, %arg1: i32) -> (i32, i32, i32) {
    %c0_i32 = arith.constant 0 : i32
    %c0_i32_0 = arith.constant 0 : i32
    %c0_i32_1 = arith.constant 0 : i32
    return %arg0, %c0_i32, %c0_i32_0 : i32, i32, i32
  }
}

</mosaic_0001>

<llo_original>
// kernel: tpu_custom_call.1
$region0: #{tpu_custom_call.1}
  #allocation0 [shape = 'u32[]', space=smem, size = 0x4, offset = 0x4, fixed_abs, tag = 'smem constant byte address 0x4 - core index']
  #allocation1 [shape = 'u32[144,128]{1,0:T(1,128)}', space=vmem, size = 0x12000, scoped, tag = 'internal scratch']
  #allocation2 [shape = 'f32[16,1]{1,0:T(8,128)}', space=vmem, size = 0x2000, scoped, tag = 'scratch operand']
  %s0 = inlined_call_operand.vmem [shape: f32[16,10], index: 0, kind: input, shape index: {}]
  %s1 = inlined_call_operand.vmem [shape: s32[16,1], index: 1, kind: input, shape index: {}]
  %s2 = inlined_call_operand.vmem [shape: f32[2,1,1], index: 2, kind: output, shape index: {}]
  %s3 = sld [smem:[#allocation0]]
  $region49: #{tpu_custom_call.1} parent=0
    _
  %s5 = ssub.s32 1, %s3
  %s6 = scalar_select 0, %s5, %s3
  loop: start=0, step=1, limit=4
  $region2: #{tpu_custom_call.1} parent=0 // loop_pre_header
    _
  $region3: #{tpu_custom_call.1} parent=0 // loop_header
    %s8 = sphi 0, %s12
    %p9 = scmp.ge.s32.totalorder %s8, 4
    %s15 = sphi 0, %s27
    %s16 = sphi 0, %s23
    %s17 = sphi 0, %s15
    %s18 = sphi 0, %s16
    %s19 = sphi 0, %s17
    %s20 = sphi 0, %s18
    %s36 = sphi 0, %s38
    %s39 = sphi 0, %s36
    %s40 = sphi 0, %s39
    %s56 = sphi 0, %s40
    %s68 = sphi 0, %s70
    %s71 = sphi 0, %s68
    %s72 = sphi 0, %s71
    %s88 = sphi 0, %s72
    %s94 = sphi 0, %s96
    %s97 = sphi 0, %s94
    %s98 = sphi 0, %s97
    %s114 = sphi 0, %s98
  $region4: #{tpu_custom_call.1} parent=0 // loop_header_branch
    %11 = sbr.rel (%p9) target = $region8
  $region5: #{tpu_custom_call.1} parent=0 // loop_body
    %s13 = ssub.s32 %s8, 1
    %s14 = ssub.s32 %s8, 2
    %s21 = sadd.s32 1, %s16
    %p22 = scmp.ge.s32.totalorder %s21, 1
    %s23 = scalar_select %p22, 0, %s21
    %s24 = sadd.s32 1, %s15
    %s25 = scalar_select %p22, %s24, %s15
    %p26 = scmp.ge.s32.totalorder %s25, 2
    %s27 = scalar_select %p26, 0, %s25
    %s28 = sadd.s32 %s15, %s16
    %p29 = scmp.lt.s32.totalorder %s28, 0
    %s30 = scalar_select %p29, %s28, 0
    %s31 = sadd.s32 %s27, %s23
    %p32 = scmp.lt.s32.totalorder %s31, 0
    %s33 = scalar_select %p32, %s31, 0
    %s34 = ssub.s32 %s30, %s33
    %p35 = scmp.eq.s32.totalorder %s34, 0
    %s37 = sadd.s32 %s36, 1
    %s38 = scalar_select %p35, %s36, %s37
    %p41 = pneg %p35
    %p42 = scmp.eq.s32.totalorder %s8, 1
    %p43 = por %p41, %p42
    %p44 = scmp.ne.s32.totalorder %s36, %s39
    %p45 = scmp.eq.s32.totalorder %s8, 0
    %p46 = por %p44, %p45
    %p47 = scmp.ne.s32.totalorder %s36, %s39
    %p48 = scmp.eq.s32.totalorder %s13, 1
    %p49 = por %p47, %p48
    %p50 = scmp.ne.s32.totalorder %s39, %s40
    %p51 = scmp.eq.s32.totalorder %s13, 0
    %p52 = por %p50, %p51
    %p53 = scmp.ne.s32.totalorder %s39, %s40
    %p54 = scmp.eq.s32.totalorder %s14, 1
    %p55 = por %p53, %p54
    %p57 = scmp.ne.s32.totalorder %s40, %s56
    %p58 = scmp.eq.s32.totalorder %s14, 0
    %p59 = por %p57, %p58
    %s60 = sadd.s32 %s15, %s16
    %p61 = scmp.lt.s32.totalorder %s60, 0
    %s62 = scalar_select %p61, %s60, 0
    %s63 = sadd.s32 %s27, %s23
    %p64 = scmp.lt.s32.totalorder %s63, 0
    %s65 = scalar_select %p64, %s63, 0
    %s66 = ssub.s32 %s62, %s65
    %p67 = scmp.eq.s32.totalorder %s66, 0
    %s69 = sadd.s32 %s68, 1
    %s70 = scalar_select %p67, %s68, %s69
    %p73 = pneg %p67
    %p74 = scmp.eq.s32.totalorder %s8, 1
    %p75 = por %p73, %p74
    %p76 = scmp.ne.s32.totalorder %s68, %s71
    %p77 = scmp.eq.s32.totalorder %s8, 0
    %p78 = por %p76, %p77
    %p79 = scmp.ne.s32.totalorder %s68, %s71
    %p80 = scmp.eq.s32.totalorder %s13, 1
    %p81 = por %p79, %p80
    %p82 = scmp.ne.s32.totalorder %s71, %s72
    %p83 = scmp.eq.s32.totalorder %s13, 0
    %p84 = por %p82, %p83
    %p85 = scmp.ne.s32.totalorder %s71, %s72
    %p86 = scmp.eq.s32.totalorder %s14, 1
    %p87 = por %p85, %p86
    %p89 = scmp.ne.s32.totalorder %s72, %s88
    %p90 = scmp.eq.s32.totalorder %s14, 0
    %p91 = por %p89, %p90
    %s92 = ssub.s32 %s15, %s27
    %p93 = scmp.eq.s32.totalorder %s92, 0
    %s95 = sadd.s32 %s94, 1
    %s96 = scalar_select %p93, %s94, %s95
    %p99 = pneg %p93
    %p100 = scmp.eq.s32.totalorder %s8, 1
    %p101 = por %p99, %p100
    %p102 = scmp.ne.s32.totalorder %s94, %s97
    %p103 = scmp.eq.s32.totalorder %s8, 0
    %p104 = por %p102, %p103
    %p105 = scmp.ne.s32.totalorder %s94, %s97
    %p106 = scmp.eq.s32.totalorder %s13, 1
    %p107 = por %p105, %p106
    %p108 = scmp.ne.s32.totalorder %s97, %s98
    %p109 = scmp.eq.s32.totalorder %s13, 0
    %p110 = por %p108, %p109
    %p111 = scmp.ne.s32.totalorder %s97, %s98
    %p112 = scmp.eq.s32.totalorder %s14, 1
    %p113 = por %p111, %p112
    %p115 = scmp.ne.s32.totalorder %s98, %s114
    %p116 = scmp.eq.s32.totalorder %s14, 0
    %p117 = por %p115, %p116
    %p118 = scmp.le.s32.totalorder 1, %s8
    %p119 = scmp.lt.s32.totalorder %s8, 3
    %p120 = pnand %p118, %p119
    %p121 = pneg %p120
    // Predicated region
    $region9: #{tpu_custom_call.1} parent=5 // pred_check
      _
    $region10: #{tpu_custom_call.1} parent=5 // pred_check_branch
      %123 = sbr.rel (%p120) target = $region12
    $region11: #{tpu_custom_call.1} parent=5 // pred_region
      %s124 = ssub.s32 %s8, 1
    $region12: #{tpu_custom_call.1} parent=5 // pred_fallthru
      _
    %p125 = scmp.lt.s32.totalorder %s8, 2
    // Predicated region
    $region13: #{tpu_custom_call.1} parent=5 // pred_check
      %p126 = pneg %p125
    $region14: #{tpu_custom_call.1} parent=5 // pred_check_branch
      %128 = sbr.rel (%p126) target = $region16
    $region15: #{tpu_custom_call.1} parent=5 // pred_region
      // Predicated region
      $region17: #{tpu_custom_call.1} parent=15 // pred_check
        %p129 = pneg %p46
      $region18: #{tpu_custom_call.1} parent=15 // pred_check_branch
        %131 = sbr.rel (%p129) target = $region20
      $region19: #{tpu_custom_call.1} parent=15 // pred_region
        %s132 = sadd.s32 %s15, %s16
        %p133 = scmp.lt.s32.totalorder %s132, 0
        %s134 = scalar_select %p133, %s132, 0
        %s135 = smul.u32 2, %s134
        %p136 = scmp.lt.s32.totalorder %s135, 1
        %s137 = scalar_select %p136, %s135, 1
        %s138 = smul.addr %s137, 8
        %s139 = scalar_lea.vmem %s0, %s138
        %s140 = sadd.s32 %s15, %s16
        %p141 = scmp.lt.s32.totalorder %s140, 0
        %s142 = scalar_select %p141, %s140, 0
        %s143 = smul.u32 2, %s142
      $region20: #{tpu_custom_call.1} parent=15 // pred_fallthru
        _
      // Predicated region
      $region21: #{tpu_custom_call.1} parent=15 // pred_check
        %p144 = pneg %p78
      $region22: #{tpu_custom_call.1} parent=15 // pred_check_branch
        %146 = sbr.rel (%p144) target = $region24
      $region23: #{tpu_custom_call.1} parent=15 // pred_region
        %s147 = sadd.s32 %s15, %s16
        %p148 = scmp.lt.s32.totalorder %s147, 0
        %s149 = scalar_select %p148, %s147, 0
        %s150 = smul.u32 2, %s149
        %p151 = scmp.lt.s32.totalorder %s150, 1
        %s152 = scalar_select %p151, %s150, 1
        %s153 = smul.addr %s152, 8
        %s154 = scalar_lea.vmem %s1, %s153
        %s155 = sadd.s32 %s15, %s16
        %p156 = scmp.lt.s32.totalorder %s155, 0
        %s157 = scalar_select %p156, %s155, 0
        %s158 = smul.u32 2, %s157
      $region24: #{tpu_custom_call.1} parent=15 // pred_fallthru
        _
    $region16: #{tpu_custom_call.1} parent=5 // pred_fallthru
      _
    %p159 = scmp.le.s32.totalorder 1, %s8
    %p160 = scmp.lt.s32.totalorder %s8, 3
    %p161 = pnand %p159, %p160
    %p162 = pneg %p161
    // Predicated region
    $region25: #{tpu_custom_call.1} parent=5 // pred_check
      _
    $region26: #{tpu_custom_call.1} parent=5 // pred_check_branch
      %164 = sbr.rel (%p161) target = $region28
    $region27: #{tpu_custom_call.1} parent=5 // pred_region
      %s165 = ssub.s32 %s8, 1
      %s166 = sadd.s32 %s17, %s18
      %p167 = scmp.lt.s32.totalorder %s166, 0
      %s168 = scalar_select %p167, %s166, 0
      %s169 = smul.u32 2, %s168
      %p170 = scmp.lt.s32.totalorder %s169, 1
      %s171 = scalar_select %p170, %s169, 1
      %s172 = smul.addr %s171, 8
      %s173 = scalar_lea.vmem %s0, %s172
      %p174 = pneg %p52
      %p175 = pneg %p49
      %s176 = sadd.s32 %s17, %s18
      %p177 = scmp.lt.s32.totalorder %s176, 0
      %s178 = scalar_select %p177, %s176, 0
      %s179 = smul.u32 2, %s178
      %p180 = scmp.lt.s32.totalorder %s179, 1
      %s181 = scalar_select %p180, %s179, 1
      %s182 = smul.addr %s181, 8
      %s183 = scalar_lea.vmem %s1, %s182
      %p184 = pneg %p84
      %p185 = pneg %p81
      %p186 = pneg %p110
      %p187 = pneg %p107
      %p188 = scmp.lt.s32.totalorder %s17, 1
      %s189 = scalar_select %p188, %s17, 1
      %s190 = scalar_lea.vmem %s2, %s189
      %s191 = sadd.s32 %s17, %s18
      %p192 = scmp.lt.s32.totalorder %s191, 0
      %s193 = scalar_select %p192, %s191, 0
      %s194 = smul.u32 2, %s193
      %p195 = scmp.lt.s32.totalorder %s194, 1
      %s196 = scalar_select %p195, %s194, 1
      %s197 = smul.addr %s196, 8
      %s198 = scalar_lea.vmem %s0, %s197
      %s199 = sadd.s32 %s17, %s18
      %p200 = scmp.lt.s32.totalorder %s199, 0
      %s201 = scalar_select %p200, %s199, 0
      %s202 = smul.u32 2, %s201
      %s203 = sadd.s32 %s17, %s18
      %p204 = scmp.lt.s32.totalorder %s203, 0
      %s205 = scalar_select %p204, %s203, 0
      %s206 = smul.u32 2, %s205
      %p207 = scmp.lt.s32.totalorder %s206, 1
      %s208 = scalar_select %p207, %s206, 1
      %s209 = smul.addr %s208, 8
      %s210 = scalar_lea.vmem %s1, %s209
      %s211 = sadd.s32 %s17, %s18
      %p212 = scmp.lt.s32.totalorder %s211, 0
      %s213 = scalar_select %p212, %s211, 0
      %s214 = smul.u32 2, %s213
      %p215 = scmp.lt.s32.totalorder %s17, 1
      %s216 = scalar_select %p215, %s17, 1
      %s217 = scalar_lea.vmem %s2, %s216
      %p218 = scmp.eq.s32.totalorder %s18, 0
      // Predicated region
      $region29: #{tpu_custom_call.1} parent=27 // pred_check
        %p219 = pneg %p218
      $region30: #{tpu_custom_call.1} parent=27 // pred_check_branch
        %221 = sbr.rel (%p219) target = $region32
      $region31: #{tpu_custom_call.1} parent=27 // pred_region
        %vm222 = vcmask 7168
        %223 = vst.msk [vmem:[#allocation2] sm:$0xff] %vm222, 0.0
        %224 = vst.msk [vmem:[#allocation2 + $0x8] sm:$0xff] %vm222, 0.0
      $region32: #{tpu_custom_call.1} parent=27 // pred_fallthru
        _
      %s225 = sadd.s32 %s17, %s18
      %s226 = smul.u32 %s225, 16
      %v227 = vlaneseq
      %v228 = vshrl.u32 %v227, 7
      %v229 = vadd.s32 %v228, 8
      %v230 = vstv %s226
      %v231 = vadd.s32 %v230, %v228
      %v232 = vadd.s32 %v230, %v229
      %vm233 = vcmp.lt.s32.totalorder %v231, 16
      %vm234 = vcmp.lt.s32.totalorder %v232, 16
      %v235 = vld [vmem:[%s198] sm:$0xff]
      %v236 = vld [vmem:[%s198 + $0x8] sm:$0xff]
      %v237 = vld [vmem:[%s210] sm:$0xff]
      %v238 = vld [vmem:[%s210 + $0x8] sm:$0xff]
      %v239 = vmul.f32 %v235, %v235
      %v240 = vmul.f32 %v236, %v236
      %vm241 = vcmask 80896
      %v242 = vsel %vm241, %v239, 0.0
      %243 = vadd.xlane.f32.xlu0 %v242
      %v244 = vpop.xlane.xlu0 %243
      %v245 = vsel %vm241, %v240, 0.0
      %246 = vadd.xlane.f32.xlu0 %v245
      %v247 = vpop.xlane.xlu0 %246
      %v248 = vrsqrt.pop %v244
      %v249 = vmul.f32 %v244, %v248
      %vm250 = vcmp.eq.f32.partialorder %v244, inf
      %v251 = vsel %vm250, %v244, %v249
      %vm252 = vcmp.eq.f32.partialorder %v244, 0.0
      %v253 = vand.u32 %v244, 2147483648
      %v254 = vsel %vm252, %v253, %v251
      %v255 = vrsqrt.pop %v247
      %v256 = vmul.f32 %v247, %v255
      %vm257 = vcmp.eq.f32.partialorder %v247, inf
      %v258 = vsel %vm257, %v247, %v256
      %vm259 = vcmp.eq.f32.partialorder %v247, 0.0
      %v260 = vand.u32 %v247, 2147483648
      %v261 = vsel %vm259, %v260, %v258
      %v262 = vadd.f32 %v254, 1e-07
      %v263 = vadd.f32 %v261, 1e-07
      %v264 = vrcp.pop %v262
      %v265 = vmul.f32 1.0, %v264
      %v266 = vrcp.pop %v263
      %v267 = vmul.f32 1.0, %v266
      %v268 = vmul.f32 %v235, %v265
      %v269 = vmul.f32 %v236, %v267
      %v270 = vsel %vm241, %v268, -inf
      %271 = vmax.xlane.f32.xlu0 %v270
      %v272 = vpop.xlane.xlu0 %271
      %v273 = vsel %vm241, %v269, -inf
      %274 = vmax.xlane.f32.xlu0 %v273
      %v275 = vpop.xlane.xlu0 %274
      %v276 = vsub.f32 %v268, %v272
      %v277 = vsub.f32 %v269, %v275
      %v278 = vmul.f32 %v276, 1.442695
      %v279 = vpow.pop %v278
      %v280 = vmul.f32 %v277, 1.442695
      %v281 = vpow.pop %v280
      %v282 = vsel %vm241, %v279, 0.0
      %283 = vadd.xlane.f32.xlu0 %v282
      %v284 = vpop.xlane.xlu0 %283
      %v285 = vsel %vm241, %v281, 0.0
      %286 = vadd.xlane.f32.xlu0 %v285
      %v287 = vpop.xlane.xlu0 %286
      %v288 = vlog2.pop %v284
      %v289 = vmul.f32 %v288, 0.6931472
      %v290 = vlog2.pop %v287
      %v291 = vmul.f32 %v290, 0.6931472
      %v292 = vadd.f32 %v272, %v289
      %v293 = vadd.f32 %v275, %v291
      %v294 = vlaneseq
      %v295 = vand.u32 %v294, 127
      %296 = vset.pattern.permute.xlu0 0
      %297 = vperm.xlu0 %296, %v237
      %v298 = vpop.permute.xlu0 %297
      %299 = vset.pattern.permute.xlu0 0
      %300 = vperm.xlu0 %299, %v238
      %v301 = vpop.permute.xlu0 %300
      %vm302 = vcmp.eq.s32.totalorder %v295, %v298
      %vm303 = vcmp.eq.s32.totalorder %v295, %v301
      %v304 = vsel %vm302, %v268, 0.0
      %v305 = vsel %vm303, %v269, 0.0
      %v306 = vsel %vm241, %v304, 0.0
      %307 = vadd.xlane.f32.xlu0 %v306
      %v308 = vpop.xlane.xlu0 %307
      %v309 = vsel %vm241, %v305, 0.0
      %310 = vadd.xlane.f32.xlu0 %v309
      %v311 = vpop.xlane.xlu0 %310
      %v312 = vld [vmem:[#allocation2] sm:$0xff]
      %v313 = vld [vmem:[#allocation2 + $0x8] sm:$0xff]
      %v314 = vsub.f32 %v292, %v308
      %v315 = vsub.f32 %v293, %v311
      %v316 = vsel %vm233, %v314, 0.0
      %v317 = vsel %vm234, %v315, 0.0
      %v318 = vadd.f32 %v312, %v316
      %v319 = vadd.f32 %v313, %v317
      %vm320 = vcmask 7168
      %321 = vst.msk [vmem:[#allocation2] sm:$0xff] %vm320, %v318
      %322 = vst.msk [vmem:[#allocation2 + $0x8] sm:$0xff] %vm320, %v319
      // Predicated region
      $region33: #{tpu_custom_call.1} parent=27 // pred_check
        %p323 = pneg %p218
      $region34: #{tpu_custom_call.1} parent=27 // pred_check_branch
        %325 = sbr.rel (%p323) target = $region36
      $region35: #{tpu_custom_call.1} parent=27 // pred_region
        %v326 = vld [vmem:[#allocation2] sm:$0xff]
        %v327 = vld [vmem:[#allocation2 + $0x8] sm:$0xff]
        %v328 = vsel %vm320, %v326, 0.0
        %v329 = vsel %vm320, %v327, 0.0
        %v330 = vadd.f32 %v328, %v329
        %v331 = vrot.slane %v330, 4
        %v332 = vadd.f32 %v330, %v331
        %v333 = vrot.slane %v332, 2
        %v334 = vadd.f32 %v332, %v333
        %v335 = vrot.slane %v334, 1
        %v336 = vadd.f32 %v334, %v335
        %vm337 = vcmask 0
        %338 = vst.msk [vmem:[%s217] sm:$0x1] %vm337, %v336
      $region36: #{tpu_custom_call.1} parent=27 // pred_fallthru
        _
      %p339 = scmp.lt.s32.totalorder %s17, 1
      %s340 = scalar_select %p339, %s17, 1
      %s341 = scalar_lea.vmem %s2, %s340
      // Predicated region
      $region37: #{tpu_custom_call.1} parent=27 // pred_check
        %p342 = pneg %p107
      $region38: #{tpu_custom_call.1} parent=27 // pred_check_branch
        %344 = sbr.rel (%p342) target = $region40
      $region39: #{tpu_custom_call.1} parent=27 // pred_region
        _
      $region40: #{tpu_custom_call.1} parent=27 // pred_fallthru
        _
    $region28: #{tpu_custom_call.1} parent=5 // pred_fallthru
      _
    %p345 = scmp.le.s32.totalorder 2, %s8
    // Predicated region
    $region41: #{tpu_custom_call.1} parent=5 // pred_check
      %p346 = pneg %p345
    $region42: #{tpu_custom_call.1} parent=5 // pred_check_branch
      %348 = sbr.rel (%p346) target = $region44
    $region43: #{tpu_custom_call.1} parent=5 // pred_region
      %s349 = ssub.s32 %s8, 2
      // Predicated region
      $region45: #{tpu_custom_call.1} parent=43 // pred_check
        %p350 = pneg %p113
      $region46: #{tpu_custom_call.1} parent=43 // pred_check_branch
        %352 = sbr.rel (%p350) target = $region48
      $region47: #{tpu_custom_call.1} parent=43 // pred_region
        %p353 = scmp.lt.s32.totalorder %s19, 1
        %s354 = scalar_select %p353, %s19, 1
        %s355 = scalar_lea.vmem %s2, %s354
      $region48: #{tpu_custom_call.1} parent=43 // pred_fallthru
        _
    $region44: #{tpu_custom_call.1} parent=5 // pred_fallthru
      _
  $region6: #{tpu_custom_call.1} parent=0 // loop_footer
    %s12 = sadd.s32 1, %s8
  $region7: #{tpu_custom_call.1} parent=0 // loop_footer_branch
    %7 = sbr.rel target = $region3
  $region8: #{tpu_custom_call.1} parent=0 // loop_exit
    _

</llo_original>
